<compile_context>
chip_gen: v6e
topology: v6e:2x2x1
jax: 0.10.0
libtpu: 0.0.40
codegen_flags: <defaults>
</compile_context>

<pallas_src>
import functools
import math

import jax
import jax.numpy as jnp
from jax.experimental import pallas as pl
from jax.experimental.pallas import tpu as pltpu


# ---------------------------------------------------------------------------
# Parameter ("buffer") setup — deterministic, mirrors the PyTorch __init__.
# ---------------------------------------------------------------------------
def make_pe_table(max_len: int, d_model: int, dtype=jnp.float32):
    position = jnp.arange(max_len, dtype=jnp.float32)[:, None]            # (L, 1)
    div_term = jnp.exp(
        jnp.arange(0, d_model, 2, dtype=jnp.float32) * (-math.log(10000.0) / d_model)
    )                                                                     # (D/2,)
    pe = jnp.zeros((max_len, 1, d_model), dtype=jnp.float32)
    pe = pe.at[:, 0, 0::2].set(jnp.sin(position * div_term))
    pe = pe.at[:, 0, 1::2].set(jnp.cos(position * div_term))
    return pe.astype(dtype)                                               # (L, 1, D)


# ---------------------------------------------------------------------------
# Kernels
# ---------------------------------------------------------------------------
def _broadcast_pe_over_batch(pe_tile, batch):
    # (TS, D) -> (TS, B*D); lane concat is cheap and lowers robustly.
    if batch == 1:
        return pe_tile
    return jnp.concatenate([pe_tile] * batch, axis=-1)


def _add_pe_kernel(x_ref, pe_ref, o_ref, *, batch):
    # x_ref: (TS, B*D), pe_ref: (TS, D)
    pe_wide = _broadcast_pe_over_batch(pe_ref[...], batch)
    o_ref[...] = (x_ref[...] + pe_wide).astype(o_ref.dtype)


def _hash_u32(h):
    # murmur3/splitmix-style finalizer: good avalanche over consecutive counters.
    h = h ^ (h >> 16)
    h = h * jnp.uint32(0x7FEB352D)
    h = h ^ (h >> 15)
    h = h * jnp.uint32(0x846CA68B)
    h = h ^ (h >> 16)
    return h


def _add_pe_dropout_kernel(seed_ref, x_ref, pe_ref, o_ref, *,
                           batch, tile_rows, row_width, threshold, inv_keep):
    # Training-mode inverted dropout. Mask is a pure function of
    # (seed, global element index) so grid iterations are order-independent.
    pe_wide = _broadcast_pe_over_batch(pe_ref[...], batch)
    y = x_ref[...] + pe_wide

    seed_u = seed_ref[0].astype(jnp.uint32)
    base_row = (pl.program_id(0) * tile_rows).astype(jnp.uint32)
    rows = jax.lax.broadcasted_iota(jnp.uint32, y.shape, 0) + base_row
    cols = jax.lax.broadcasted_iota(jnp.uint32, y.shape, 1)
    ctr = rows * jnp.uint32(row_width) + cols
    ctr = ctr + seed_u * jnp.uint32(0x9E3779B9)
    bits = _hash_u32(ctr)

    # Integer-threshold compare: keep with probability (2^32 - threshold)/2^32 = 1-p.
    keep = bits >= jnp.uint32(threshold)
    o_ref[...] = jnp.where(keep, y * jnp.float32(inv_keep),
                           jnp.zeros_like(y)).astype(o_ref.dtype)


# ---------------------------------------------------------------------------
# Wrapper
# ---------------------------------------------------------------------------
def _choose_tile_rows(num_rows, row_bytes, target_bytes=2 << 20):
    """Largest row-tile with ~target_bytes per tile; multiple of 8 when partial."""
    if num_rows * row_bytes <= target_bytes:
        return int(num_rows)
    ts = max(8, (target_bytes // row_bytes) // 8 * 8)
    return int(min(ts, num_rows))


def positional_encoding_forward(x, pe, *, dropout_p=0.1, training=False, seed=0):
    """x: [S, B, D]; pe: [max_len, 1, D] (as produced by make_pe_table)."""
    S, B, D = x.shape
    BD = B * D
    x2 = x.reshape(S, BD)                  # lane-dense slab
    pe2 = pe[:S, 0, :]                     # (S, D), streamed once along S

    TS = _choose_tile_rows(S, BD * x.dtype.itemsize)
    grid = (pl.cdiv(S, TS),)

    compiler_params = pltpu.CompilerParams(
        dimension_semantics=("parallel",),
        vmem_limit_bytes=64 * 1024 * 1024,
    )

    if (not training) or dropout_p == 0.0:
        kernel = functools.partial(_add_pe_kernel, batch=B)
        out2 = pl.pallas_call(
            kernel,
            out_shape=jax.ShapeDtypeStruct((S, BD), x.dtype),
            grid_spec=pltpu.PrefetchScalarGridSpec(
                num_scalar_prefetch=0,
                grid=grid,
                in_specs=[
                    pl.BlockSpec((TS, BD), lambda i: (i, 0)),
                    pl.BlockSpec((TS, D), lambda i: (i, 0)),
                ],
                out_specs=pl.BlockSpec((TS, BD), lambda i: (i, 0)),
            ),
            compiler_params=compiler_params,
        )(x2, pe2)
        return out2.reshape(S, B, D)

    p = float(dropout_p)
    threshold = int(round(p * (2.0 ** 32)))
    kernel = functools.partial(
        _add_pe_dropout_kernel,
        batch=B, tile_rows=TS, row_width=BD,
        threshold=threshold, inv_keep=1.0 / (1.0 - p),
    )
    seed_arr = jnp.array([seed], dtype=jnp.int32)
    out2 = pl.pallas_call(
        kernel,
        out_shape=jax.ShapeDtypeStruct((S, BD), x.dtype),
        grid_spec=pltpu.PrefetchScalarGridSpec(
            num_scalar_prefetch=1,            # seed lands in SMEM
            grid=grid,
            in_specs=[
                pl.BlockSpec((TS, BD), lambda i, seed_ref: (i, 0)),
                pl.BlockSpec((TS, D), lambda i, seed_ref: (i, 0)),
            ],
            out_specs=pl.BlockSpec((TS, BD), lambda i, seed_ref: (i, 0)),
        ),
        compiler_params=compiler_params,
    )(seed_arr, x2, pe2)
    return out2.reshape(S, B, D)


# ---------------------------------------------------------------------------
# Demo / correctness check
# ---------------------------------------------------------------------------
if __name__ == "__main__":
    S, B, D = 8, 4, 32          # seq_len, batch, d_model (B*D = 128 lanes)
    MAX_LEN = 64                # small max_len for the demo (module default 5000)

    key = jax.random.PRNGKey(0)
    x = jax.random.normal(key, (S, B, D), dtype=jnp.float32)
    pe = make_pe_table(MAX_LEN, D)

    # Eval-mode path (dropout is identity) — verify against plain-JAX reference.
    out = jax.block_until_ready(positional_encoding_forward(x, pe, training=False))
    ref = x + pe[:S]
    assert out.shape == (S, B, D)
    assert jnp.allclose(out, ref, atol=1e-6), "mismatch vs reference"

    # Training-mode path (inverted dropout, p=0.1, deterministic hash PRNG).
    out_tr = jax.block_until_ready(
        positional_encoding_forward(x, pe, dropout_p=0.1, training=True, seed=42)
    )
    assert out_tr.shape == (S, B, D)
    # Each output element is either 0 or (x + pe) / (1 - p).
    scaled_ref = ref / 0.9
    is_zero = jnp.isclose(out_tr, 0.0, atol=1e-6)
    ok = jnp.logical_or(is_zero, jnp.isclose(out_tr, scaled_ref, atol=1e-5, rtol=1e-5))
    assert bool(jnp.all(ok))
    drop_frac = float(jnp.mean(is_zero))
    assert 0.02 < drop_frac < 0.25, f"unexpected drop fraction {drop_frac}"

    print("KERNEL_OK")
</pallas_src>

<mosaic_0001>
module attributes {stable_mosaic.version = 11 : i64} {
  func.func @_add_pe_kernel(%arg0: i32, %arg1: memref<8x128xf32, #tpu.memory_space<vmem>>, %arg2: memref<8x32xf32, #tpu.memory_space<vmem>>, %arg3: memref<8x128xf32, #tpu.memory_space<vmem>>) attributes {dimension_semantics = [#tpu.dimension_semantics<parallel>], iteration_bounds = array<i64: 1>, scalar_prefetch = 0 : i64, scratch_operands = 0 : i64, tpu.core_type = #tpu.core_type<tc>, window_params = [{transform_indices = @transform_0, window_bounds = array<i64: 8, 128>}, {transform_indices = @transform_1, window_bounds = array<i64: 8, 32>}, {transform_indices = @transform_2, window_bounds = array<i64: 8, 128>}]} {
    %c0 = arith.constant 0 : index
    %c0_0 = arith.constant 0 : index
    %0 = vector.load %arg2[%c0, %c0_0] : memref<8x32xf32, #tpu.memory_space<vmem>>, vector<8x32xf32>
    %1 = tpu.concatenate %0, %0, %0, %0 in 1 : vector<8x32xf32>, vector<8x32xf32>, vector<8x32xf32>, vector<8x32xf32> -> vector<8x128xf32>
    %c0_1 = arith.constant 0 : index
    %c0_2 = arith.constant 0 : index
    %2 = vector.load %arg1[%c0_1, %c0_2] : memref<8x128xf32, #tpu.memory_space<vmem>>, vector<8x128xf32>
    %3 = arith.addf %2, %1 : vector<8x128xf32>
    %c0_3 = arith.constant 0 : index
    %c0_4 = arith.constant 0 : index
    %4 = vector.load %arg3[%c0_3, %c0_4] : memref<8x128xf32, #tpu.memory_space<vmem>>, vector<8x128xf32>
    tpu.vector_store %arg3[%c0_3, %c0_4], %3 {strides = array<i32>} : memref<8x128xf32, #tpu.memory_space<vmem>>, vector<8x128xf32>,
    return
  }
  func.func @transform_0(%arg0: i32) -> (i32, i32) {
    %c0_i32 = arith.constant 0 : i32
    %c0_i32_0 = arith.constant 0 : i32
    return %arg0, %c0_i32 : i32, i32
  }
  func.func @transform_1(%arg0: i32) -> (i32, i32) {
    %c0_i32 = arith.constant 0 : i32
    %c0_i32_0 = arith.constant 0 : i32
    return %arg0, %c0_i32 : i32, i32
  }
  func.func @transform_2(%arg0: i32) -> (i32, i32) {
    %c0_i32 = arith.constant 0 : i32
    %c0_i32_0 = arith.constant 0 : i32
    return %arg0, %c0_i32 : i32, i32
  }
}

</mosaic_0001>

<llo_original>
// kernel: tpu_custom_call.1
$region0: #{tpu_custom_call.1}
  #allocation0 [shape = 'u32[]', space=smem, size = 0x4, offset = 0x4, fixed_abs, tag = 'smem constant byte address 0x4 - core index']
  #allocation1 [shape = 'u32[144,128]{1,0:T(1,128)}', space=vmem, size = 0x12000, scoped, tag = 'internal scratch']
  %s0 = inlined_call_operand.hbm [shape: f32[8,128], index: 0, kind: input, shape index: {}]
  %s1 = inlined_call_operand.hbm [shape: f32[8,32], index: 1, kind: input, shape index: {}]
  %s2 = inlined_call_operand.hbm [shape: f32[8,128], index: 2, kind: output, shape index: {}]
  %s3 = sld [smem:[#allocation0]]
  $region26: #{tpu_custom_call.1} parent=0
    _
  %s5 = ssub.s32 1, %s3
  %s6 = scalar_select 0, %s5, %s3
  $region1: #{tpu_custom_call.1} parent=0
    #allocation2 [shape = 'u8[4096]{0}', space=vmem, size = 0x1000, scoped, tag = 'input window, operand 0, single buffered']
    #allocation3 [shape = 's32[1]{0}', space=sflag, size = 0x4, scoped, tag = 'scoped memory for tpu_custom_call.1']
    #allocation4 [shape = 's32[1]{0}', space=sflag, size = 0x4, scoped, tag = 'scoped memory for tpu_custom_call.1']
    #allocation5 [shape = 'u8[4096]{0}', space=vmem, size = 0x1000, scoped, tag = 'input window, operand 1, single buffered']
    #allocation6 [shape = 's32[1]{0}', space=sflag, size = 0x4, scoped, tag = 'scoped memory for tpu_custom_call.1']
    #allocation7 [shape = 'u8[4096]{0}', space=vmem, size = 0x1000, scoped, tag = 'output window, operand 0, single buffered']
    %7 = vsyncpa [#allocation3], 0
    %8 = vsyncpa [#allocation6], 0
    %9 = vsyncpa [#allocation4], 0
    // Predicated region
    $region2: #{tpu_custom_call.1} parent=1 // pred_check
      _
    $region3: #{tpu_custom_call.1} parent=1 // pred_check_branch
      %11 = sbr.rel (0) target = $region5
    $region4: #{tpu_custom_call.1} parent=1 // pred_region
      %s13 = ssub.s32 128, 128
      %14 = vsyncadd [#allocation3], %s13
      %s16 = sshll.u32 [#allocation2], 4
      %s17 = int_to_ptr.vmem [resolvable:$true] %s16
      %19 = dma.hbm_to_vmem [thread:$0]  %s0, 128, %s17, [#allocation3]
    $region5: #{tpu_custom_call.1} parent=1 // pred_fallthru
      _
    // Predicated region
    $region6: #{tpu_custom_call.1} parent=1 // pred_check
      _
    $region7: #{tpu_custom_call.1} parent=1 // pred_check_branch
      %21 = sbr.rel (0) target = $region9
    $region8: #{tpu_custom_call.1} parent=1 // pred_region
      %s23 = ssub.s32 128, 128
      %24 = vsyncadd [#allocation6], %s23
      %s26 = sshll.u32 [#allocation5], 4
      %s27 = int_to_ptr.vmem [resolvable:$true] %s26
      %29 = dma.hbm_to_vmem [thread:$0]  %s1, 128, %s27, [#allocation6]
    $region9: #{tpu_custom_call.1} parent=1 // pred_fallthru
      _
    // Predicated region
    $region10: #{tpu_custom_call.1} parent=1 // pred_check
      _
    $region11: #{tpu_custom_call.1} parent=1 // pred_check_branch
      %31 = sbr.rel (0) target = $region13
    $region12: #{tpu_custom_call.1} parent=1 // pred_region
      %32 = dma.done [#allocation3], 128
    $region13: #{tpu_custom_call.1} parent=1 // pred_fallthru
      _
    // Predicated region
    $region14: #{tpu_custom_call.1} parent=1 // pred_check
      _
    $region15: #{tpu_custom_call.1} parent=1 // pred_check_branch
      %34 = sbr.rel (0) target = $region17
    $region16: #{tpu_custom_call.1} parent=1 // pred_region
      %35 = dma.done [#allocation6], 128
    $region17: #{tpu_custom_call.1} parent=1 // pred_fallthru
      _
    %v36 = vld [vmem:[#allocation5] sm:$0xff]
    %38 = vrot.lane.b32.xlu0 %v36, 32
    %v39 = vpop.permute.xlu0 %38
    %41 = vrot.lane.b32.xlu0 %v36, 64
    %v42 = vpop.permute.xlu0 %41
    %44 = vrot.lane.b32.xlu0 %v36, 96
    %v45 = vpop.permute.xlu0 %44
    %vm47 = vcmask 261120
    %v48 = vsel %vm47, %v36, %v39
    %vm49 = vcmask 523264
    %v50 = vsel %vm49, %v48, %v42
    %vm51 = vcmask 785408
    %v52 = vsel %vm51, %v50, %v45
    %v53 = vld [vmem:[#allocation2] sm:$0xff]
    %v54 = vadd.f32 %v53, %v52
    %55 = vst [vmem:[#allocation7] sm:$0xff] %v54
    // Predicated region
    $region18: #{tpu_custom_call.1} parent=1 // pred_check
      _
    $region19: #{tpu_custom_call.1} parent=1 // pred_check_branch
      %57 = sbr.rel (0) target = $region21
    $region20: #{tpu_custom_call.1} parent=1 // pred_region
      %s59 = ssub.s32 128, 128
      %60 = vsyncadd [#allocation4], %s59
      %s62 = sshll.u32 [#allocation7], 4
      %s63 = int_to_ptr.vmem [resolvable:$true] %s62
      %65 = dma.vmem_to_hbm [thread:$0]  %s63, 128, %s2, [#allocation4]
    $region21: #{tpu_custom_call.1} parent=1 // pred_fallthru
      _
    // Predicated region
    $region22: #{tpu_custom_call.1} parent=1 // pred_check
      _
    $region23: #{tpu_custom_call.1} parent=1 // pred_check_branch
      %67 = sbr.rel (0) target = $region25
    $region24: #{tpu_custom_call.1} parent=1 // pred_region
      %68 = dma.done [#allocation4], 128
    $region25: #{tpu_custom_call.1} parent=1 // pred_fallthru
      _
    %69 = vsyncpa [#allocation3], 1
    %70 = vsyncpa [#allocation6], 1
    %71 = vsyncpa [#allocation4], 1

</llo_original>
